<compile_context>
chip_gen: v5e
topology: v5e:2x2
jax: 0.10.0
libtpu: 0.0.40
codegen_flags: <defaults>
</compile_context>

<pallas_src>
import math
import functools

import jax
import jax.numpy as jnp
from jax.experimental import pallas as pl
from jax.experimental.pallas import tpu as pltpu


_INV_SQRT2 = 1.0 / math.sqrt(2.0)
_LANE_ALIGN = 256          # full 2x256 MXU passes on v6e/v7x (v5e only needs 128)


def _mlm_head_kernel(x_ref, w1_ref, b1_ref, g_ref, beta_ref, w2_ref, b2_ref,
                     o_ref, h_ref, *, eps):
    # Grid = (row tiles ["parallel"], vocab tiles ["arbitrary", innermost]).
    #
    # NOTE: the transform result is cached in `h_ref` at vocab tile j == 0 and
    # reused by every j of the same row tile.  This is only correct because the
    # vocab axis is the innermost, sequentially executed ("arbitrary") grid
    # axis -- do not reorder the grid or mark that axis "parallel".
    @pl.when(pl.program_id(1) == 0)
    def _():
        # dense: matmul-dtype operands straight to the MXU, f32 accumulate
        h = jnp.dot(x_ref[...], w1_ref[...], preferred_element_type=jnp.float32)
        h = h + b1_ref[...].astype(jnp.float32)
        # gelu (erf formulation, matches the reference `gelu`)
        h = h * 0.5 * (1.0 + jax.lax.erf(h * jnp.float32(_INV_SQRT2)))
        # LayerNorm over hidden dim (f32 statistics, biased variance)
        mu = jnp.mean(h, axis=-1, keepdims=True)
        var = jnp.mean(jnp.square(h - mu), axis=-1, keepdims=True)
        h = (h - mu) * jax.lax.rsqrt(var + jnp.float32(eps))
        h = h * g_ref[...].astype(jnp.float32) + beta_ref[...].astype(jnp.float32)
        h_ref[...] = h.astype(h_ref.dtype)

    # decoder matmul for this vocab tile (+ bias); f32 accumulator, single cast
    logits = jnp.dot(h_ref[...], w2_ref[...], preferred_element_type=jnp.float32)
    logits = logits + b2_ref[...].astype(jnp.float32)
    o_ref[...] = logits.astype(o_ref.dtype)


def _round_up(x, m):
    return (x + m - 1) // m * m


def _round_down(x, m):
    return (x // m) * m


def _vmem_capacity_bytes():
    try:
        return int(pltpu.get_tpu_info().vmem_capacity_bytes)
    except Exception:
        return 64 << 20          # conservative fallback (v7x-sized VMEM)


def _tile_plan(N, H, V, tm, tn, isz_mm, isz_vec, isz_out):
    """Clamp/align tile sizes and shrink them until the working set fits VMEM."""
    sublane = max(8, 32 // isz_mm)          # 8 for f32, 16 for bf16, 32 for 8-bit

    tm = min(tm, _round_up(N, sublane))
    tm = max(sublane, _round_down(tm, sublane))
    # Keep >= 2 row tiles so v7x's two TensorCores both get work, but never
    # drop a tile below ~512 rows (the w2-stream roofline on v5e/v6e).
    if N <= tm and N >= 2 * 512:
        tm = max(512, _round_up((N + 1) // 2, sublane))

    tn = min(tn, _round_up(V, _LANE_ALIGN))
    tn = max(_LANE_ALIGN, _round_down(tn, _LANE_ALIGN))

    def est(tm_, tn_):
        # double-buffered streaming tiles + (still double-buffered) constant
        # blocks + the resident transform scratch
        return (2 * (tm_ * H * isz_mm            # x tile
                     + H * tn_ * isz_mm          # decoder weight tile
                     + tn_ * isz_vec             # decoder bias tile
                     + tm_ * tn_ * isz_out)      # output tile
                + 2 * (H * H * isz_mm + 3 * H * isz_vec)
                + tm_ * H * isz_mm)

    budget = int(_vmem_capacity_bytes() * 0.85)   # leave compiler headroom
    while est(tm, tn) > budget and tn > _LANE_ALIGN:
        tn = max(_LANE_ALIGN, _round_down(tn // 2, _LANE_ALIGN))
    while est(tm, tn) > budget and tm > 4 * sublane:
        tm = max(sublane, _round_down(tm // 2, sublane))

    return tm, tn, _round_up(N, tm), est(tm, tn)


def prepare_params(params, *, tn=2048, matmul_dtype=jnp.bfloat16):
    """One-time parameter prep (hoists per-call work out of the forward path):
    casts the matmul weights to `matmul_dtype` and pads the decoder weight/bias
    to a vocab-tile multiple, so the forward does no jnp.pad / astype of the
    large (H, V) weight on every call."""
    p = dict(params)
    V = p["decoder_w"].shape[1]
    tn_eff = max(_LANE_ALIGN,
                 _round_down(min(tn, _round_up(V, _LANE_ALIGN)), _LANE_ALIGN))
    Vp = _round_up(V, tn_eff)
    mm = jnp.dtype(matmul_dtype)

    p["dense_w"] = p["dense_w"].astype(mm)
    w2 = p["decoder_w"].astype(mm)
    b2 = p["decoder_bias"]
    if Vp != V:
        w2 = jnp.pad(w2, ((0, 0), (0, Vp - V)))
        b2 = jnp.pad(b2, ((0, 0), (0, Vp - V)))
    p["decoder_w"], p["decoder_bias"] = w2, b2
    p["vocab_size"] = V
    return p


def bert_only_mlm_head(sequence_output, params, *, eps=1e-12, tm=1024, tn=2048,
                       matmul_dtype=None, return_padded=False):
    """sequence_output: [B, S, H] -> prediction_scores: [B, S, V].

    matmul_dtype=None: bfloat16 when the params are f32 (perf default),
    otherwise the params' own dtype.  Pass jnp.float32 for the exact path.
    return_padded=True returns the raw (Np, Vp) logits (mask in the loss) and
    skips the un-pad slice entirely.
    """
    B, S, H = sequence_output.shape
    w1, b1 = params["dense_w"], params["dense_b"]
    g, bt = params["ln_gamma"], params["ln_beta"]
    w2, b2 = params["decoder_w"], params["decoder_bias"]
    V = int(params.get("vocab_size", w2.shape[1]))
    N = B * S

    if matmul_dtype is None:
        matmul_dtype = jnp.bfloat16 if w1.dtype == jnp.float32 else w1.dtype
    mm_dtype = jnp.dtype(matmul_dtype)
    out_dtype = sequence_output.dtype

    tm, tn, Np, vmem_est = _tile_plan(
        N, H, V, tm, tn,
        jnp.dtype(mm_dtype).itemsize,
        jnp.dtype(b1.dtype).itemsize,
        jnp.dtype(out_dtype).itemsize)

    # Matmul operands in mm_dtype (full-rate MXU, half the HBM bytes for the
    # streamed decoder weight); biases / LN params stay as-is and are applied
    # in f32 inside the kernel.
    x = sequence_output.reshape(N, H).astype(mm_dtype)
    if Np != N:
        x = jnp.pad(x, ((0, Np - N), (0, 0)))
    if w1.dtype != mm_dtype:
        w1 = w1.astype(mm_dtype)
    if w2.dtype != mm_dtype:
        w2 = w2.astype(mm_dtype)

    # Decoder padding (no-op if params went through prepare_params).
    W = w2.shape[1]
    if W >= V and W % tn == 0:
        Vp = W
    else:
        Vp = _round_up(max(V, W), tn)
        w2 = jnp.pad(w2, ((0, 0), (0, Vp - W)))
    if b2.shape[1] != Vp:
        b2 = jnp.pad(b2, ((0, 0), (0, Vp - b2.shape[1])))

    cap = _vmem_capacity_bytes()
    vmem_limit = int(min(cap - (2 << 20),
                         max(32 << 20, vmem_est + vmem_est // 4 + (4 << 20))))

    row_tiles = Np // tm
    isz = lambda a: jnp.dtype(a.dtype).itemsize
    cost = pl.CostEstimate(
        flops=2 * Np * H * H + 2 * Np * H * Vp,
        transcendentals=Np * H,                     # one erf per transform element
        bytes_accessed=int(
            Np * H * isz(x)                         # x: once per row tile
            + H * H * isz(w1)                       # dense weight: resident
            + row_tiles * (H * Vp * isz(w2)         # decoder weight: re-streamed
                           + Vp * isz(b2))          #   once per row tile
            + Np * Vp * jnp.dtype(out_dtype).itemsize),
    )

    kernel = functools.partial(_mlm_head_kernel, eps=eps)

    # TODO(synk): for tiny N (where tm can't reach the w2-stream roofline) a
    # two-pass vocab-outer layout that reads the decoder weight exactly once
    # would cut HBM traffic further; not needed for typical training batches.
    out = pl.pallas_call(
        kernel,
        out_shape=jax.ShapeDtypeStruct((Np, Vp), out_dtype),
        grid_spec=pltpu.PrefetchScalarGridSpec(
            num_scalar_prefetch=0,
            grid=(Np // tm, Vp // tn),                        # rows outer, vocab inner
            in_specs=[
                pl.BlockSpec((tm, H), lambda i, j: (i, 0)),   # token rows (tiled)
                pl.BlockSpec((H, H), lambda i, j: (0, 0)),    # dense weight (resident)
                pl.BlockSpec((1, H), lambda i, j: (0, 0)),    # dense bias
                pl.BlockSpec((1, H), lambda i, j: (0, 0)),    # LayerNorm gamma
                pl.BlockSpec((1, H), lambda i, j: (0, 0)),    # LayerNorm beta
                pl.BlockSpec((H, tn), lambda i, j: (0, j)),   # decoder weight tile
                pl.BlockSpec((1, tn), lambda i, j: (0, j)),   # decoder bias tile
            ],
            out_specs=pl.BlockSpec((tm, tn), lambda i, j: (i, j)),
            scratch_shapes=[pltpu.VMEM((tm, H), mm_dtype)],   # cached transform
        ),
        compiler_params=pltpu.CompilerParams(
            dimension_semantics=("parallel", "arbitrary"),
            vmem_limit_bytes=vmem_limit),
        cost_estimate=cost,
    )(x, w1, b1, g, bt, w2, b2)

    if return_padded:
        return out                                   # (Np, Vp); mask in the loss
    if Np != N or Vp != V:
        out = out[:N, :V]
    return out.reshape(B, S, V)


def init_params(key, hidden_size, vocab_size, dtype=jnp.float32):
    k1, k2, k3 = jax.random.split(key, 3)
    scale = 0.02
    return {
        # stored as [in, out] (transpose of torch nn.Linear weight)
        "dense_w": (scale * jax.random.normal(k1, (hidden_size, hidden_size))).astype(dtype),
        "dense_b": (scale * jax.random.normal(k2, (1, hidden_size))).astype(dtype),
        "ln_gamma": jnp.ones((1, hidden_size), dtype),
        "ln_beta": jnp.zeros((1, hidden_size), dtype),
        "decoder_w": (scale * jax.random.normal(k3, (hidden_size, vocab_size))).astype(dtype),
        "decoder_bias": jnp.zeros((1, vocab_size), dtype),   # nn.Parameter(torch.zeros(vocab))
    }


def _reference(sequence_output, params, eps=1e-12):
    x = sequence_output.astype(jnp.float32)
    h = x @ params["dense_w"].astype(jnp.float32) + params["dense_b"].astype(jnp.float32)
    h = h * 0.5 * (1.0 + jax.lax.erf(h / jnp.float32(math.sqrt(2.0))))
    mu = jnp.mean(h, axis=-1, keepdims=True)
    var = jnp.mean((h - mu) ** 2, axis=-1, keepdims=True)
    h = (h - mu) / jnp.sqrt(var + eps)
    h = h * params["ln_gamma"].astype(jnp.float32) + params["ln_beta"].astype(jnp.float32)
    return h @ params["decoder_w"].astype(jnp.float32) + params["decoder_bias"].astype(jnp.float32)


if __name__ == "__main__":
    key = jax.random.PRNGKey(0)
    B, S, H, V = 2, 24, 32, 384  # small BERT-like config (N=48, vocab needs padding)

    k_x, k_p = jax.random.split(key)
    sequence_output = jax.random.normal(k_x, (B, S, H), dtype=jnp.float32)
    params = init_params(k_p, H, V)
    ref = _reference(sequence_output, params).reshape(B, S, V)

    # 1) exact path (f32 matmuls); small tiles so the 2-D grid, the cached
    #    transform reuse across vocab tiles and the vocab padding are exercised
    out_f32 = bert_only_mlm_head(sequence_output, params, tm=16, tn=256,
                                 matmul_dtype=jnp.float32)
    out_f32 = jax.block_until_ready(out_f32)
    assert out_f32.shape == (B, S, V)
    assert jnp.allclose(out_f32, ref, atol=1e-4, rtol=1e-4)

    # 2) production path: bf16 matmul operands + pre-padded / pre-cast decoder
    #    weights (prepare_params), looser tolerance for the bf16 accuracy loss
    params_prepped = prepare_params(params, tn=256)
    out_bf16 = bert_only_mlm_head(sequence_output, params_prepped, tm=16, tn=256)
    out_bf16 = jax.block_until_ready(out_bf16)
    assert out_bf16.shape == (B, S, V)
    assert jnp.allclose(out_bf16, ref, atol=5e-2, rtol=5e-2)

    print("KERNEL_OK")
</pallas_src>

<mosaic_0001>
module attributes {stable_mosaic.version = 11 : i64} {
  func.func @_mlm_head_kernel(%arg0: i32, %arg1: i32, %arg2: memref<16x32xf32, #tpu.memory_space<vmem>>, %arg3: memref<32x32xf32, #tpu.memory_space<vmem>>, %arg4: memref<1x32xf32, #tpu.memory_space<vmem>>, %arg5: memref<1x32xf32, #tpu.memory_space<vmem>>, %arg6: memref<1x32xf32, #tpu.memory_space<vmem>>, %arg7: memref<32x256xf32, #tpu.memory_space<vmem>>, %arg8: memref<1x256xf32, #tpu.memory_space<vmem>>, %arg9: memref<16x256xf32, #tpu.memory_space<vmem>>, %arg10: memref<16x32xf32, #tpu.memory_space<vmem>>) attributes {dimension_semantics = [#tpu.dimension_semantics<parallel>, #tpu.dimension_semantics<arbitrary>], iteration_bounds = array<i64: 3, 2>, scalar_prefetch = 0 : i64, scratch_operands = 1 : i64, tpu.core_type = #tpu.core_type<tc>, window_params = [{transform_indices = @transform_0, window_bounds = array<i64: 16, 32>}, {pipeline_mode = #tpu.pipeline_mode<synchronous>, transform_indices = @transform_1, window_bounds = array<i64: 32, 32>}, {pipeline_mode = #tpu.pipeline_mode<synchronous>, transform_indices = @transform_2, window_bounds = array<i64: 1, 32>}, {pipeline_mode = #tpu.pipeline_mode<synchronous>, transform_indices = @transform_3, window_bounds = array<i64: 1, 32>}, {pipeline_mode = #tpu.pipeline_mode<synchronous>, transform_indices = @transform_4, window_bounds = array<i64: 1, 32>}, {transform_indices = @transform_5, window_bounds = array<i64: 32, 256>}, {transform_indices = @transform_6, window_bounds = array<i64: 1, 256>}, {transform_indices = @transform_7, window_bounds = array<i64: 16, 256>}]} {
    %c0_i32 = arith.constant 0 : i32
    %0 = arith.cmpi eq, %arg1, %c0_i32 : i32
    %1 = arith.extui %0 : i1 to i32
    %c0_i32_0 = arith.constant 0 : i32
    %2 = arith.cmpi ne, %1, %c0_i32_0 : i32
    scf.if %2 {
      %c0_8 = arith.constant 0 : index
      %c0_9 = arith.constant 0 : index
      %10 = vector.load %arg2[%c0_8, %c0_9] : memref<16x32xf32, #tpu.memory_space<vmem>>, vector<16x32xf32>
      %c0_10 = arith.constant 0 : index
      %c0_11 = arith.constant 0 : index
      %11 = vector.load %arg3[%c0_10, %c0_11] : memref<32x32xf32, #tpu.memory_space<vmem>>, vector<32x32xf32>
      %cst_12 = arith.constant dense<0.000000e+00> : vector<16x32xf32>
      %12 = tpu.matmul %10, %11, %cst_12 {dimension_numbers = #tpu.dot_dimension_numbers<[1], [0], [0], [1], [0, 0, 1, 1], [], []>} : vector<16x32xf32>, vector<32x32xf32>, vector<16x32xf32> -> vector<16x32xf32>
      %c0_13 = arith.constant 0 : index
      %c0_14 = arith.constant 0 : index
      %13 = vector.load %arg4[%c0_13, %c0_14] : memref<1x32xf32, #tpu.memory_space<vmem>>, vector<1x32xf32>
      %14 = vector.broadcast %13 : vector<1x32xf32> to vector<16x32xf32>
      %15 = arith.addf %12, %14 : vector<16x32xf32>
      %cst_15 = arith.constant 5.000000e-01 : f32
      %16 = vector.broadcast %cst_15 : f32 to vector<16x32xf32>
      %17 = arith.mulf %15, %16 : vector<16x32xf32>
      %cst_16 = arith.constant 0.707106769 : f32
      %18 = vector.broadcast %cst_16 : f32 to vector<16x32xf32>
      %19 = arith.mulf %15, %18 : vector<16x32xf32>
      %20 = math.erf %19 : vector<16x32xf32>
      %cst_17 = arith.constant 1.000000e+00 : f32
      %21 = vector.broadcast %cst_17 : f32 to vector<16x32xf32>
      %22 = arith.addf %21, %20 : vector<16x32xf32>
      %23 = arith.mulf %17, %22 : vector<16x32xf32>
      %cst_18 = arith.constant dense<0.000000e+00> : vector<16xf32>
      %24 = vector.multi_reduction <add>, %23, %cst_18 [1] : vector<16x32xf32> to vector<16xf32>
      %25 = vector.shape_cast %24 : vector<16xf32> to vector<16x1xf32>
      %cst_19 = arith.constant 3.200000e+01 : f32
      %26 = vector.broadcast %cst_19 : f32 to vector<16x1xf32>
      %27 = arith.divf %25, %26 : vector<16x1xf32>
      %28 = vector.broadcast %27 : vector<16x1xf32> to vector<16x32xf32>
      %29 = arith.subf %23, %28 : vector<16x32xf32>
      %30 = arith.mulf %29, %29 : vector<16x32xf32>
      %cst_20 = arith.constant dense<0.000000e+00> : vector<16xf32>
      %31 = vector.multi_reduction <add>, %30, %cst_20 [1] : vector<16x32xf32> to vector<16xf32>
      %32 = vector.shape_cast %31 : vector<16xf32> to vector<16x1xf32>
      %cst_21 = arith.constant 3.200000e+01 : f32
      %33 = vector.broadcast %cst_21 : f32 to vector<16x1xf32>
      %34 = arith.divf %32, %33 : vector<16x1xf32>
      %35 = vector.broadcast %27 : vector<16x1xf32> to vector<16x32xf32>
      %36 = arith.subf %23, %35 : vector<16x32xf32>
      %cst_22 = arith.constant 9.99999996E-13 : f32
      %37 = vector.broadcast %cst_22 : f32 to vector<16x1xf32>
      %38 = arith.addf %34, %37 : vector<16x1xf32>
      %39 = math.rsqrt %38 : vector<16x1xf32>
      %40 = vector.broadcast %39 : vector<16x1xf32> to vector<16x32xf32>
      %41 = arith.mulf %36, %40 : vector<16x32xf32>
      %c0_23 = arith.constant 0 : index
      %c0_24 = arith.constant 0 : index
      %42 = vector.load %arg5[%c0_23, %c0_24] : memref<1x32xf32, #tpu.memory_space<vmem>>, vector<1x32xf32>
      %43 = vector.broadcast %42 : vector<1x32xf32> to vector<16x32xf32>
      %44 = arith.mulf %41, %43 : vector<16x32xf32>
      %c0_25 = arith.constant 0 : index
      %c0_26 = arith.constant 0 : index
      %45 = vector.load %arg6[%c0_25, %c0_26] : memref<1x32xf32, #tpu.memory_space<vmem>>, vector<1x32xf32>
      %46 = vector.broadcast %45 : vector<1x32xf32> to vector<16x32xf32>
      %47 = arith.addf %44, %46 : vector<16x32xf32>
      %c0_27 = arith.constant 0 : index
      %c0_28 = arith.constant 0 : index
      %48 = vector.load %arg10[%c0_27, %c0_28] : memref<16x32xf32, #tpu.memory_space<vmem>>, vector<16x32xf32>
      tpu.vector_store %arg10[%c0_27, %c0_28], %47 {strides = array<i32>} : memref<16x32xf32, #tpu.memory_space<vmem>>, vector<16x32xf32>,
    } else {
    }
    %c0 = arith.constant 0 : index
    %c0_1 = arith.constant 0 : index
    %3 = vector.load %arg10[%c0, %c0_1] : memref<16x32xf32, #tpu.memory_space<vmem>>, vector<16x32xf32>
    %c0_2 = arith.constant 0 : index
    %c0_3 = arith.constant 0 : index
    %4 = vector.load %arg7[%c0_2, %c0_3] : memref<32x256xf32, #tpu.memory_space<vmem>>, vector<32x256xf32>
    %cst = arith.constant dense<0.000000e+00> : vector<16x256xf32>
    %5 = tpu.matmul %3, %4, %cst {dimension_numbers = #tpu.dot_dimension_numbers<[1], [0], [0], [1], [0, 0, 1, 1], [], []>} : vector<16x32xf32>, vector<32x256xf32>, vector<16x256xf32> -> vector<16x256xf32>
    %c0_4 = arith.constant 0 : index
    %c0_5 = arith.constant 0 : index
    %6 = vector.load %arg8[%c0_4, %c0_5] : memref<1x256xf32, #tpu.memory_space<vmem>>, vector<1x256xf32>
    %7 = vector.broadcast %6 : vector<1x256xf32> to vector<16x256xf32>
    %8 = arith.addf %5, %7 : vector<16x256xf32>
    %c0_6 = arith.constant 0 : index
    %c0_7 = arith.constant 0 : index
    %9 = vector.load %arg9[%c0_6, %c0_7] : memref<16x256xf32, #tpu.memory_space<vmem>>, vector<16x256xf32>
    tpu.vector_store %arg9[%c0_6, %c0_7], %8 {strides = array<i32>} : memref<16x256xf32, #tpu.memory_space<vmem>>, vector<16x256xf32>,
    return
  }
  func.func @transform_0(%arg0: i32, %arg1: i32) -> (i32, i32) {
    %c0_i32 = arith.constant 0 : i32
    %c0_i32_0 = arith.constant 0 : i32
    return %arg0, %c0_i32 : i32, i32
  }
  func.func @transform_1(%arg0: i32, %arg1: i32) -> (i32, i32) {
    %c0_i32 = arith.constant 0 : i32
    %c0_i32_0 = arith.constant 0 : i32
    %c0_i32_1 = arith.constant 0 : i32
    return %c0_i32, %c0_i32_0 : i32, i32
  }
  func.func @transform_2(%arg0: i32, %arg1: i32) -> (i32, i32) {
    %c0_i32 = arith.constant 0 : i32
    %c0_i32_0 = arith.constant 0 : i32
    %c0_i32_1 = arith.constant 0 : i32
    return %c0_i32, %c0_i32_0 : i32, i32
  }
  func.func @transform_3(%arg0: i32, %arg1: i32) -> (i32, i32) {
    %c0_i32 = arith.constant 0 : i32
    %c0_i32_0 = arith.constant 0 : i32
    %c0_i32_1 = arith.constant 0 : i32
    return %c0_i32, %c0_i32_0 : i32, i32
  }
  func.func @transform_4(%arg0: i32, %arg1: i32) -> (i32, i32) {
    %c0_i32 = arith.constant 0 : i32
    %c0_i32_0 = arith.constant 0 : i32
    %c0_i32_1 = arith.constant 0 : i32
    return %c0_i32, %c0_i32_0 : i32, i32
  }
  func.func @transform_5(%arg0: i32, %arg1: i32) -> (i32, i32) {
    %c0_i32 = arith.constant 0 : i32
    %c0_i32_0 = arith.constant 0 : i32
    return %c0_i32, %arg1 : i32, i32
  }
  func.func @transform_6(%arg0: i32, %arg1: i32) -> (i32, i32) {
    %c0_i32 = arith.constant 0 : i32
    %c0_i32_0 = arith.constant 0 : i32
    return %c0_i32, %arg1 : i32, i32
  }
  func.func @transform_7(%arg0: i32, %arg1: i32) -> (i32, i32) {
    %c0_i32 = arith.constant 0 : i32
    return %arg0, %arg1 : i32, i32
  }
}

</mosaic_0001>

<llo_original>
// kernel: tpu_custom_call.1
$region0: #{tpu_custom_call.1}
  #allocation0 [shape = 'u32[]', space=smem, size = 0x4, offset = 0x4, fixed_abs, tag = 'smem constant byte address 0x4 - core index']
  #allocation1 [shape = 'u32[72,128]{1,0:T(1,128)}', space=vmem, size = 0x9000, scoped, tag = 'internal scratch']
  #allocation2 [shape = 'f32[16,32]{1,0:T(8,128)}', space=vmem, size = 0x2000, scoped, tag = 'scratch operand']
  %s0 = inlined_call_operand.vmem [shape: f32[48,32], index: 0, kind: input, shape index: {}]
  %s1 = inlined_call_operand.vmem [shape: f32[32,32], index: 1, kind: input, shape index: {}]
  %s2 = inlined_call_operand.vmem [shape: f32[1,32], index: 2, kind: input, shape index: {}]
  %s3 = inlined_call_operand.vmem [shape: f32[1,32], index: 3, kind: input, shape index: {}]
  %s4 = inlined_call_operand.vmem [shape: f32[1,32], index: 4, kind: input, shape index: {}]
  %s5 = inlined_call_operand.hbm [shape: f32[32,512], index: 5, kind: input, shape index: {}]
  %s6 = inlined_call_operand.vmem [shape: f32[1,512], index: 6, kind: input, shape index: {}]
  %s7 = inlined_call_operand.hbm [shape: f32[48,512], index: 7, kind: output, shape index: {}]
  %s8 = sld [smem:[#allocation0]]
  $region69: #{tpu_custom_call.1} parent=0
    _
  %s10 = ssub.s32 1, %s8
  %s11 = scalar_select 0, %s10, %s8
  $region1: #{tpu_custom_call.1} parent=0
    #allocation3 [shape = 'u8[65536]{0}', space=vmem, size = 0x10000, scoped, tag = 'input window, operand 5']
    #allocation4 [shape = 's32[2]{0}', space=sflag, size = 0x8, scoped, tag = 'scoped memory for tpu_custom_call.1']
    #allocation5 [shape = 's32[2]{0}', space=sflag, size = 0x8, scoped, tag = 'scoped memory for tpu_custom_call.1']
    #allocation6 [shape = 'u8[32768]{0}', space=vmem, size = 0x8000, scoped, tag = 'output window, operand 0']
    %12 = vsyncpa [#allocation4], 0
    %s13 = scalar_lea.sflag [#allocation4], 1
    %14 = vsyncpa %s13, 0
    %15 = vsyncpa [#allocation5], 0
    %s16 = scalar_lea.sflag [#allocation5], 1
    %17 = vsyncpa %s16, 0
    loop: start=0, step=1, limit=8
    $region2: #{tpu_custom_call.1} parent=1 // loop_pre_header
      _
    $region3: #{tpu_custom_call.1} parent=1 // loop_header
      %s19 = sphi 0, %s23
      %p20 = scmp.ge.s32.totalorder %s19, 8
      %s26 = sphi 0, %s38
      %s27 = sphi 0, %s34
      %s28 = sphi 0, %s26
      %s29 = sphi 0, %s27
      %s30 = sphi 0, %s28
      %s31 = sphi 0, %s29
      %s41 = sphi 0, %s43
      %s44 = sphi 0, %s41
      %s45 = sphi 0, %s44
      %s61 = sphi 0, %s45
      %s65 = sphi 0, %s65
      %s67 = sphi 0, %s65
      %s68 = sphi 0, %s67
      %s82 = sphi 0, %s68
      %s86 = sphi 0, %s86
      %s88 = sphi 0, %s86
      %s89 = sphi 0, %s88
      %s103 = sphi 0, %s89
      %s107 = sphi 0, %s107
      %s109 = sphi 0, %s107
      %s110 = sphi 0, %s109
      %s124 = sphi 0, %s110
      %s128 = sphi 0, %s128
      %s130 = sphi 0, %s128
      %s131 = sphi 0, %s130
      %s145 = sphi 0, %s131
      %s151 = sphi 0, %s153
      %s154 = sphi 0, %s151
      %s155 = sphi 0, %s154
      %s171 = sphi 0, %s155
      %s177 = sphi 0, %s179
      %s180 = sphi 0, %s177
      %s181 = sphi 0, %s180
      %s197 = sphi 0, %s181
      %s205 = sphi 0, %s207
      %s208 = sphi 0, %s205
      %s209 = sphi 0, %s208
      %s225 = sphi 0, %s209
    $region4: #{tpu_custom_call.1} parent=1 // loop_header_branch
      %22 = sbr.rel (%p20) target = $region8
    $region5: #{tpu_custom_call.1} parent=1 // loop_body
      %s24 = ssub.s32 %s19, 1
      %s25 = ssub.s32 %s19, 2
      %s32 = sadd.s32 1, %s27
      %p33 = scmp.ge.s32.totalorder %s32, 2
      %s34 = scalar_select %p33, 0, %s32
      %s35 = sadd.s32 1, %s26
      %s36 = scalar_select %p33, %s35, %s26
      %p37 = scmp.ge.s32.totalorder %s36, 3
      %s38 = scalar_select %p37, 0, %s36
      %s39 = ssub.s32 %s26, %s38
      %p40 = scmp.eq.s32.totalorder %s39, 0
      %s42 = sadd.s32 %s41, 1
      %s43 = scalar_select %p40, %s41, %s42
      %p46 = pneg %p40
      %p47 = scmp.eq.s32.totalorder %s19, 5
      %p48 = por %p46, %p47
      %p49 = scmp.ne.s32.totalorder %s41, %s44
      %p50 = scmp.eq.s32.totalorder %s19, 0
      %p51 = por %p49, %p50
      %p52 = scmp.ne.s32.totalorder %s41, %s44
      %p53 = scmp.eq.s32.totalorder %s24, 5
      %p54 = por %p52, %p53
      %p55 = scmp.ne.s32.totalorder %s44, %s45
      %p56 = scmp.eq.s32.totalorder %s24, 0
      %p57 = por %p55, %p56
      %p58 = scmp.ne.s32.totalorder %s44, %s45
      %p59 = scmp.eq.s32.totalorder %s25, 5
      %p60 = por %p58, %p59
      %p62 = scmp.ne.s32.totalorder %s45, %s61
      %p63 = scmp.eq.s32.totalorder %s25, 0
      %p64 = por %p62, %p63
      %s66 = sadd.s32 %s65, 1
      %p69 = scmp.eq.s32.totalorder %s19, 5
      %p70 = scmp.ne.s32.totalorder %s65, %s67
      %p71 = scmp.eq.s32.totalorder %s19, 0
      %p72 = por %p70, %p71
      %p73 = scmp.ne.s32.totalorder %s65, %s67
      %p74 = scmp.eq.s32.totalorder %s24, 5
      %p75 = por %p73, %p74
      %p76 = scmp.ne.s32.totalorder %s67, %s68
      %p77 = scmp.eq.s32.totalorder %s24, 0
      %p78 = por %p76, %p77
      %p79 = scmp.ne.s32.totalorder %s67, %s68
      %p80 = scmp.eq.s32.totalorder %s25, 5
      %p81 = por %p79, %p80
      %p83 = scmp.ne.s32.totalorder %s68, %s82
      %p84 = scmp.eq.s32.totalorder %s25, 0
      %p85 = por %p83, %p84
      %s87 = sadd.s32 %s86, 1
      %p90 = scmp.eq.s32.totalorder %s19, 5
      %p91 = scmp.ne.s32.totalorder %s86, %s88
      %p92 = scmp.eq.s32.totalorder %s19, 0
      %p93 = por %p91, %p92
      %p94 = scmp.ne.s32.totalorder %s86, %s88
      %p95 = scmp.eq.s32.totalorder %s24, 5
      %p96 = por %p94, %p95
      %p97 = scmp.ne.s32.totalorder %s88, %s89
      %p98 = scmp.eq.s32.totalorder %s24, 0
      %p99 = por %p97, %p98
      %p100 = scmp.ne.s32.totalorder %s88, %s89
      %p101 = scmp.eq.s32.totalorder %s25, 5
      %p102 = por %p100, %p101
      %p104 = scmp.ne.s32.totalorder %s89, %s103
      %p105 = scmp.eq.s32.totalorder %s25, 0
      %p106 = por %p104, %p105
      %s108 = sadd.s32 %s107, 1
      %p111 = scmp.eq.s32.totalorder %s19, 5
      %p112 = scmp.ne.s32.totalorder %s107, %s109
      %p113 = scmp.eq.s32.totalorder %s19, 0
      %p114 = por %p112, %p113
      %p115 = scmp.ne.s32.totalorder %s107, %s109
      %p116 = scmp.eq.s32.totalorder %s24, 5
      %p117 = por %p115, %p116
      %p118 = scmp.ne.s32.totalorder %s109, %s110
      %p119 = scmp.eq.s32.totalorder %s24, 0
      %p120 = por %p118, %p119
      %p121 = scmp.ne.s32.totalorder %s109, %s110
      %p122 = scmp.eq.s32.totalorder %s25, 5
      %p123 = por %p121, %p122
      %p125 = scmp.ne.s32.totalorder %s110, %s124
      %p126 = scmp.eq.s32.totalorder %s25, 0
      %p127 = por %p125, %p126
      %s129 = sadd.s32 %s128, 1
      %p132 = scmp.eq.s32.totalorder %s19, 5
      %p133 = scmp.ne.s32.totalorder %s128, %s130
      %p134 = scmp.eq.s32.totalorder %s19, 0
      %p135 = por %p133, %p134
      %p136 = scmp.ne.s32.totalorder %s128, %s130
      %p137 = scmp.eq.s32.totalorder %s24, 5
      %p138 = por %p136, %p137
      %p139 = scmp.ne.s32.totalorder %s130, %s131
      %p140 = scmp.eq.s32.totalorder %s24, 0
      %p141 = por %p139, %p140
      %p142 = scmp.ne.s32.totalorder %s130, %s131
      %p143 = scmp.eq.s32.totalorder %s25, 5
      %p144 = por %p142, %p143
      %p146 = scmp.ne.s32.totalorder %s131, %s145
      %p147 = scmp.eq.s32.totalorder %s25, 0
      %p148 = por %p146, %p147
      %s149 = ssub.s32 %s27, %s34
      %p150 = scmp.eq.s32.totalorder %s149, 0
      %s152 = sadd.s32 %s151, 1
      %s153 = scalar_select %p150, %s151, %s152
      %p156 = pneg %p150
      %p157 = scmp.eq.s32.totalorder %s19, 5
      %p158 = por %p156, %p157
      %p159 = scmp.ne.s32.totalorder %s151, %s154
      %p160 = scmp.eq.s32.totalorder %s19, 0
      %p161 = por %p159, %p160
      %p162 = scmp.ne.s32.totalorder %s151, %s154
      %p163 = scmp.eq.s32.totalorder %s24, 5
      %p164 = por %p162, %p163
      %p165 = scmp.ne.s32.totalorder %s154, %s155
      %p166 = scmp.eq.s32.totalorder %s24, 0
      %p167 = por %p165, %p166
      %p168 = scmp.ne.s32.totalorder %s154, %s155
      %p169 = scmp.eq.s32.totalorder %s25, 5
      %p170 = por %p168, %p169
      %p172 = scmp.ne.s32.totalorder %s155, %s171
      %p173 = scmp.eq.s32.totalorder %s25, 0
      %p174 = por %p172, %p173
      %s175 = ssub.s32 %s27, %s34
      %p176 = scmp.eq.s32.totalorder %s175, 0
      %s178 = sadd.s32 %s177, 1
      %s179 = scalar_select %p176, %s177, %s178
      %p182 = pneg %p176
      %p183 = scmp.eq.s32.totalorder %s19, 5
      %p184 = por %p182, %p183
      %p185 = scmp.ne.s32.totalorder %s177, %s180
      %p186 = scmp.eq.s32.totalorder %s19, 0
      %p187 = por %p185, %p186
      %p188 = scmp.ne.s32.totalorder %s177, %s180
      %p189 = scmp.eq.s32.totalorder %s24, 5
      %p190 = por %p188, %p189
      %p191 = scmp.ne.s32.totalorder %s180, %s181
      %p192 = scmp.eq.s32.totalorder %s24, 0
      %p193 = por %p191, %p192
      %p194 = scmp.ne.s32.totalorder %s180, %s181
      %p195 = scmp.eq.s32.totalorder %s25, 5
      %p196 = por %p194, %p195
      %p198 = scmp.ne.s32.totalorder %s181, %s197
      %p199 = scmp.eq.s32.totalorder %s25, 0
      %p200 = por %p198, %p199
      %s201 = ssub.s32 %s26, %s38
      %s202 = ssub.s32 %s27, %s34
      %s203 = sor.u32 %s201, %s202
      %p204 = scmp.eq.s32.totalorder %s203, 0
      %s206 = sadd.s32 %s205, 1
      %s207 = scalar_select %p204, %s205, %s206
      %p210 = pneg %p204
      %p211 = scmp.eq.s32.totalorder %s19, 5
      %p212 = por %p210, %p211
      %p213 = scmp.ne.s32.totalorder %s205, %s208
      %p214 = scmp.eq.s32.totalorder %s19, 0
      %p215 = por %p213, %p214
      %p216 = scmp.ne.s32.totalorder %s205, %s208
      %p217 = scmp.eq.s32.totalorder %s24, 5
      %p218 = por %p216, %p217
      %p219 = scmp.ne.s32.totalorder %s208, %s209
      %p220 = scmp.eq.s32.totalorder %s24, 0
      %p221 = por %p219, %p220
      %p222 = scmp.ne.s32.totalorder %s208, %s209
      %p223 = scmp.eq.s32.totalorder %s25, 5
      %p224 = por %p222, %p223
      %p226 = scmp.ne.s32.totalorder %s209, %s225
      %p227 = scmp.eq.s32.totalorder %s25, 0
      %p228 = por %p226, %p227
      %p229 = scmp.le.s32.totalorder 1, %s19
      %p230 = scmp.lt.s32.totalorder %s19, 7
      %p231 = pnand %p229, %p230
      %p232 = pneg %p231
      // Predicated region
      $region9: #{tpu_custom_call.1} parent=5 // pred_check
        _
      $region10: #{tpu_custom_call.1} parent=5 // pred_check_branch
        %234 = sbr.rel (%p231) target = $region12
      $region11: #{tpu_custom_call.1} parent=5 // pred_region
        %s235 = ssub.s32 %s19, 1
        // Predicated region
        $region13: #{tpu_custom_call.1} parent=11 // pred_check
          %p236 = pneg %p78
        $region14: #{tpu_custom_call.1} parent=11 // pred_check_branch
          %238 = sbr.rel (%p236) target = $region16
        $region15: #{tpu_custom_call.1} parent=11 // pred_region
          _
        $region16: #{tpu_custom_call.1} parent=11 // pred_fallthru
          _
        // Predicated region
        $region17: #{tpu_custom_call.1} parent=11 // pred_check
          %p239 = pneg %p99
        $region18: #{tpu_custom_call.1} parent=11 // pred_check_branch
          %241 = sbr.rel (%p239) target = $region20
        $region19: #{tpu_custom_call.1} parent=11 // pred_region
          _
        $region20: #{tpu_custom_call.1} parent=11 // pred_fallthru
          _
        // Predicated region
        $region21: #{tpu_custom_call.1} parent=11 // pred_check
          %p242 = pneg %p120
        $region22: #{tpu_custom_call.1} parent=11 // pred_check_branch
          %244 = sbr.rel (%p242) target = $region24
        $region23: #{tpu_custom_call.1} parent=11 // pred_region
          _
        $region24: #{tpu_custom_call.1} parent=11 // pred_fallthru
          _
        // Predicated region
        $region25: #{tpu_custom_call.1} parent=11 // pred_check
          %p245 = pneg %p141
        $region26: #{tpu_custom_call.1} parent=11 // pred_check_branch
          %247 = sbr.rel (%p245) target = $region28
        $region27: #{tpu_custom_call.1} parent=11 // pred_region
          _
        $region28: #{tpu_custom_call.1} parent=11 // pred_fallthru
          _
      $region12: #{tpu_custom_call.1} parent=5 // pred_fallthru
        _
      %p248 = scmp.lt.s32.totalorder %s19, 6
      // Predicated region
      $region29: #{tpu_custom_call.1} parent=5 // pred_check
        %p249 = pneg %p248
      $region30: #{tpu_custom_call.1} parent=5 // pred_check_branch
        %251 = sbr.rel (%p249) target = $region32
      $region31: #{tpu_custom_call.1} parent=5 // pred_region
        // Predicated region
        $region33: #{tpu_custom_call.1} parent=31 // pred_check
          %p252 = pneg %p51
        $region34: #{tpu_custom_call.1} parent=31 // pred_check_branch
          %254 = sbr.rel (%p252) target = $region36
        $region35: #{tpu_custom_call.1} parent=31 // pred_region
          %s255 = smul.u32 2, %s26
          %p256 = scmp.lt.s32.totalorder %s255, 5
          %s257 = scalar_select %p256, %s255, 5
          %s258 = smul.addr %s257, 8
          %s259 = scalar_lea.vmem %s0, %s258
          %s260 = smul.u32 2, %s26
        $region36: #{tpu_custom_call.1} parent=31 // pred_fallthru
          _
        // Predicated region
        $region37: #{tpu_custom_call.1} parent=31 // pred_check
          %p261 = pneg %p161
        $region38: #{tpu_custom_call.1} parent=31 // pred_check_branch
          %263 = sbr.rel (%p261) target = $region40
        $region39: #{tpu_custom_call.1} parent=31 // pred_region
          %s264 = sand.u32 %s151, 1
          %s265 = scalar_lea.sflag [#allocation4], %s264
          %s266 = sand.u32 %s151, 1
          %s267 = smul.addr %s266, 64
          %s268 = scalar_lea.vmem [#allocation3], %s267
          %s269 = smul.u32 2, %s27
          %271 = vsyncadd %s265, 0
          %s272 = smul.addr %s269, 8
          %s273 = scalar_lea.hbm %s5, %s272
          %s274 = sshll.u32 %s273, 4
          %s275 = int_to_ptr.hbm [resolvable:$true] %s274
          %s276 = sshll.u32 %s268, 4
          %s277 = int_to_ptr.vmem [resolvable:$true] %s276
          %282 = dma.hbm_to_vmem [thread:$0]  %s275, 1024, %s277, %s265, 512, 256, 16
        $region40: #{tpu_custom_call.1} parent=31 // pred_fallthru
          _
        // Predicated region
        $region41: #{tpu_custom_call.1} parent=31 // pred_check
          %p283 = pneg %p187
        $region42: #{tpu_custom_call.1} parent=31 // pred_check_branch
          %285 = sbr.rel (%p283) target = $region44
        $region43: #{tpu_custom_call.1} parent=31 // pred_region
          %s286 = smul.u32 2, %s27
          %p287 = scmp.lt.s32.totalorder %s286, 3
          %s288 = scalar_select %p287, %s286, 3
          %s289 = scalar_lea.vmem %s6, %s288
          %s290 = smul.u32 2, %s27
        $region44: #{tpu_custom_call.1} parent=31 // pred_fallthru
          _
      $region32: #{tpu_custom_call.1} parent=5 // pred_fallthru
        _
      %p291 = scmp.le.s32.totalorder 1, %s19
      %p292 = scmp.lt.s32.totalorder %s19, 7
      %p293 = pnand %p291, %p292
      %p294 = pneg %p293
      // Predicated region
      $region45: #{tpu_custom_call.1} parent=5 // pred_check
        _
      $region46: #{tpu_custom_call.1} parent=5 // pred_check_branch
        %296 = sbr.rel (%p293) target = $region48
      $region47: #{tpu_custom_call.1} parent=5 // pred_region
        %s297 = ssub.s32 %s19, 1
        %s298 = sand.u32 %s154, 1
        %s299 = scalar_lea.sflag [#allocation4], %s298
        %s300 = sand.u32 %s154, 1
        %s301 = smul.addr %s300, 64
        %s302 = scalar_lea.vmem [#allocation3], %s301
        // Predicated region
        $region49: #{tpu_custom_call.1} parent=47 // pred_check
          %p303 = pneg %p167
        $region50: #{tpu_custom_call.1} parent=47 // pred_check_branch
          %305 = sbr.rel (%p303) target = $region52
        $region51: #{tpu_custom_call.1} parent=47 // pred_region
          %307 = dma.done %s299, 1024
        $region52: #{tpu_custom_call.1} parent=47 // pred_fallthru
          _
        %s308 = smul.u32 2, %s28
        %p309 = scmp.lt.s32.totalorder %s308, 5
        %s310 = scalar_select %p309, %s308, 5
        %s311 = smul.addr %s310, 8
        %s312 = scalar_lea.vmem %s0, %s311
        %p313 = pneg %p57
        %p314 = pneg %p54
        %p315 = pneg %p78
        %p316 = pneg %p75
        %p317 = pneg %p99
        %p318 = pneg %p96
        %p319 = pneg %p120
        %p320 = pneg %p117
        %p321 = pneg %p141
        %p322 = pneg %p138
        %s323 = sand.u32 %s154, 1
        %s324 = scalar_lea.sflag [#allocation4], %s323
        %s325 = sand.u32 %s154, 1
        %s326 = smul.addr %s325, 64
        %s327 = scalar_lea.vmem [#allocation3], %s326
        %p328 = pneg %p167
        %p329 = pneg %p164
        %s330 = smul.u32 2, %s29
        %p331 = scmp.lt.s32.totalorder %s330, 3
        %s332 = scalar_select %p331, %s330, 3
        %s333 = scalar_lea.vmem %s6, %s332
        %p334 = pneg %p193
        %p335 = pneg %p190
        %p336 = pneg %p221
        %p337 = pneg %p218
        %s338 = sand.u32 %s208, 1
        %s339 = scalar_lea.sflag [#allocation5], %s338
        %s340 = sand.u32 %s208, 1
        %s341 = smul.addr %s340, 32
        %s342 = scalar_lea.vmem [#allocation6], %s341
        %s343 = smul.u32 2, %s28
        %p344 = scmp.lt.s32.totalorder %s343, 5
        %s345 = scalar_select %p344, %s343, 5
        %s346 = smul.addr %s345, 8
        %s347 = scalar_lea.vmem %s0, %s346
        %s348 = smul.u32 2, %s28
        %s349 = smul.u32 2, %s29
        %s350 = smul.u32 2, %s29
        %p351 = scmp.lt.s32.totalorder %s350, 3
        %s352 = scalar_select %p351, %s350, 3
        %s353 = scalar_lea.vmem %s6, %s352
        %s354 = smul.u32 2, %s29
        %s355 = smul.u32 2, %s28
        %s356 = smul.u32 2, %s29
        %p357 = scmp.eq.s32.totalorder %s29, 0
        // Predicated region
        $region53: #{tpu_custom_call.1} parent=47 // pred_check
          %p358 = pneg %p357
        $region54: #{tpu_custom_call.1} parent=47 // pred_check_branch
          %360 = sbr.rel (%p358) target = $region56
        $region55: #{tpu_custom_call.1} parent=47 // pred_region
          %v361 = vld [vmem:[%s347] sm:$0xff]
          %v362 = vld [vmem:[%s347 + $0x8] sm:$0xff]
          %v363 = vld [vmem:[%s1] sm:$0xff]
          %v364 = vld [vmem:[%s1 + $0x8] sm:$0xff]
          %v365 = vld [vmem:[%s1 + $0x10] sm:$0xff]
          %v366 = vld [vmem:[%s1 + $0x18] sm:$0xff]
          %v367 = vld [vmem:[%s2] sm:$0x1]
          %v369 = vperm.slane %v367, 0
          %vm371 = vcmask 261120
          %v373 = vsel %vm371, %v361, 0
          %v376 = vsel %vm371, %v362, 0
          %378 = vmatpush.msra.mxu0 0.0
          %379 = vmatpush.msra.mxu0 0.0
          %380 = vmatpush.msra.mxu0 0.0
          %381 = vmatpush.msra.mxu0 0.0
          %382 = vmatpush.msra.mxu0 0.0
          %383 = vmatpush.msra.mxu0 0.0
          %384 = vmatpush.msra.mxu0 0.0
          %385 = vmatpush.msra.mxu0 0.0
          %386 = vmatpush.msra.mxu0 0.0
          %387 = vmatpush.msra.mxu0 0.0
          %388 = vmatpush.msra.mxu0 0.0
          %389 = vmatpush.msra.mxu0 0.0
          %390 = vmatpush.msra.mxu0 %v366
          %391 = vmatpush.msra.mxu0 %v365
          %392 = vmatpush.msra.mxu0 %v364
          %393 = vmatpush.msra.mxu0 %v363
          %394 = vmatmul.f32.gmra.mxu0 %v373
          %v395 = vpop.f32.mrf.mxu0
          %v396 = vadd.f32 %v369, %v395
          %397 = vmatmul.f32.gmra.mxu0 %v376
          %v398 = vpop.f32.mrf.mxu0
          %v399 = vadd.f32 %v369, %v398
          %400 = vdwg.mxu0
          %v401 = vmul.f32 %v396, 0.5
          %v402 = vmul.f32 %v399, 0.5
          %v403 = vmul.f32 %v396, 0.70710677
          %v404 = vmul.f32 %v399, 0.70710677
          %v405 = vmul.f32 %v403, %v403
          %v406 = vmin.f32 16.0, %v405
          %v407 = vmul.f32 %v406, 2.1237322e-06
          %v408 = vadd.f32 %v407, 0.00028619796
          %v409 = vmul.f32 %v406, %v408
          %v410 = vadd.f32 %v409, 0.0036580483
          %v411 = vmul.f32 %v406, %v410
          %v412 = vadd.f32 %v411, 0.05243302
          %v413 = vmul.f32 %v406, %v412
          %v414 = vadd.f32 %v413, 0.18741608
          %v415 = vmul.f32 %v406, %v414
          %v416 = vadd.f32 %v415, 1.1283791
          %v417 = vmul.f32 %v403, %v416
          %v418 = vmul.f32 %v406, 3.8918573e-05
          %v419 = vadd.f32 %v418, 0.001143296
          %v420 = vmul.f32 %v406, %v419
          %v421 = vadd.f32 %v420, 0.014752088
          %v422 = vmul.f32 %v406, %v421
          %v423 = vadd.f32 %v422, 0.112945676
          %v424 = vmul.f32 %v406, %v423
          %v425 = vadd.f32 %v424, 0.4994258
          %v426 = vmul.f32 %v406, %v425
          %v427 = vadd.f32 %v426, 1.0
          %v428 = vrcp.pop %v427
          %v429 = vmul.f32 %v427, %v428
          %v430 = vsub.f32 1.0, %v429
          %v431 = vmul.f32 %v428, %v430
          %v432 = vadd.f32 %v428, %v431
          %vm433 = vweird.f32 %v427
          %vm434 = vweird.f32 %v428
          %vm435 = vmor %vm433, %vm434
          %v436 = vsel %vm435, %v428, %v432
          %v437 = vand.u32 2147483647, %v427
          %vm438 = vcmp.eq.f32.partialorder %v437, 8.507059e+37
          %v439 = vand.u32 %v427, 2147483648
          %v440 = vor.u32 1.1754944e-38, %v439
          %v441 = vsel %vm438, %v440, %v436
          %v442 = vmul.f32 %v417, %v441
          %v443 = vmin.f32 %v442, 1.0
          %v444 = vmax.f32 %v443, -1.0
          %v445 = vmul.f32 %v404, %v404
          %v446 = vmin.f32 16.0, %v445
          %v447 = vmul.f32 %v446, 2.1237322e-06
          %v448 = vadd.f32 %v447, 0.00028619796
          %v449 = vmul.f32 %v446, %v448
          %v450 = vadd.f32 %v449, 0.0036580483
          %v451 = vmul.f32 %v446, %v450
          %v452 = vadd.f32 %v451, 0.05243302
          %v453 = vmul.f32 %v446, %v452
          %v454 = vadd.f32 %v453, 0.18741608
          %v455 = vmul.f32 %v446, %v454
          %v456 = vadd.f32 %v455, 1.1283791
          %v457 = vmul.f32 %v404, %v456
          %v458 = vmul.f32 %v446, 3.8918573e-05
          %v459 = vadd.f32 %v458, 0.001143296
          %v460 = vmul.f32 %v446, %v459
          %v461 = vadd.f32 %v460, 0.014752088
          %v462 = vmul.f32 %v446, %v461
          %v463 = vadd.f32 %v462, 0.112945676
          %v464 = vmul.f32 %v446, %v463
          %v465 = vadd.f32 %v464, 0.4994258
          %v466 = vmul.f32 %v446, %v465
          %v467 = vadd.f32 %v466, 1.0
          %v468 = vrcp.pop %v467
          %v469 = vmul.f32 %v467, %v468
          %v470 = vsub.f32 1.0, %v469
          %v471 = vmul.f32 %v468, %v470
          %v472 = vadd.f32 %v468, %v471
          %vm473 = vweird.f32 %v467
          %vm474 = vweird.f32 %v468
          %vm475 = vmor %vm473, %vm474
          %v476 = vsel %vm475, %v468, %v472
          %v477 = vand.u32 2147483647, %v467
          %vm478 = vcmp.eq.f32.partialorder %v477, 8.507059e+37
          %v479 = vand.u32 %v467, 2147483648
          %v480 = vor.u32 1.1754944e-38, %v479
          %v481 = vsel %vm478, %v480, %v476
          %v482 = vmul.f32 %v457, %v481
          %v483 = vmin.f32 %v482, 1.0
          %v484 = vmax.f32 %v483, -1.0
          %v485 = vadd.f32 %v444, 1.0
          %v486 = vadd.f32 %v484, 1.0
          %v487 = vmul.f32 %v401, %v485
          %v488 = vmul.f32 %v402, %v486
          %v489 = vsel %vm371, %v487, 0.0
          %490 = vadd.xlane.f32.xlu0 %v489
          %v491 = vpop.xlane.xlu0 %490
          %v492 = vsel %vm371, %v488, 0.0
          %493 = vadd.xlane.f32.xlu0 %v492
          %v494 = vpop.xlane.xlu0 %493
          %v495 = vrcp.pop 32.0
          %v496 = vmul.f32 32.0, %v495
          %v497 = vsub.f32 1.0, %v496
          %v498 = vmul.f32 %v495, %v497
          %v499 = vadd.f32 %v495, %v498
          %vm500 = vweird.f32 %v495
          %v501 = vsel %vm500, %v495, %v499
          %v502 = vmul.f32 %v491, %v501
          %v503 = vmul.f32 %v494, %v501
          %v504 = vsub.f32 %v487, %v502
          %v505 = vsub.f32 %v488, %v503
          %v506 = vmul.f32 %v504, %v504
          %v507 = vmul.f32 %v505, %v505
          %v508 = vsel %vm371, %v506, 0.0
          %509 = vadd.xlane.f32.xlu0 %v508
          %v510 = vpop.xlane.xlu0 %509
          %v511 = vsel %vm371, %v507, 0.0
          %512 = vadd.xlane.f32.xlu0 %v511
          %v513 = vpop.xlane.xlu0 %512
          %v514 = vmul.f32 %v510, %v501
          %v515 = vmul.f32 %v513, %v501
          %v516 = vadd.f32 %v514, 1e-12
          %v517 = vadd.f32 %v515, 1e-12
          %v518 = vrsqrt.pop %v516
          %v519 = vmul.f32 %v518, %v516
          %v520 = vmul.f32 %v519, %v518
          %v521 = vmul.f32 0.5, %v520
          %v522 = vsub.f32 1.5, %v521
          %v523 = vmul.f32 %v518, %v522
          %vm524 = vweird.f32 %v516
          %vm525 = vweird.f32 %v518
          %vm526 = vmor %vm524, %vm525
          %v527 = vsel %vm526, %v518, %v523
          %v528 = vrsqrt.pop %v517
          %v529 = vmul.f32 %v528, %v517
          %v530 = vmul.f32 %v529, %v528
          %v531 = vmul.f32 0.5, %v530
          %v532 = vsub.f32 1.5, %v531
          %v533 = vmul.f32 %v528, %v532
          %vm534 = vweird.f32 %v517
          %vm535 = vweird.f32 %v528
          %vm536 = vmor %vm534, %vm535
          %v537 = vsel %vm536, %v528, %v533
          %v538 = vmul.f32 %v504, %v527
          %v539 = vmul.f32 %v505, %v537
          %v540 = vld [vmem:[%s3] sm:$0x1]
          %v542 = vperm.slane %v540, 0
          %v544 = vmul.f32 %v538, %v542
          %v545 = vmul.f32 %v539, %v542
          %v546 = vld [vmem:[%s4] sm:$0x1]
          %v548 = vperm.slane %v546, 0
          %v550 = vadd.f32 %v544, %v548
          %v551 = vadd.f32 %v545, %v548
          %552 = vst.msk [vmem:[#allocation2] sm:$0xff] %vm371, %v550
          %553 = vst.msk [vmem:[#allocation2 + $0x8] sm:$0xff] %vm371, %v551
        $region56: #{tpu_custom_call.1} parent=47 // pred_fallthru
          _
        %v554 = vld [vmem:[#allocation2] sm:$0xff]
        %v555 = vld [vmem:[#allocation2 + $0x8] sm:$0xff]
        %v556 = vld [vmem:[%s302] sm:$0xff]
        %v557 = vld [vmem:[%s302 + $0x8] sm:$0xff]
        %v558 = vld [vmem:[%s302 + $0x10] sm:$0xff]
        %v559 = vld [vmem:[%s302 + $0x18] sm:$0xff]
        %v560 = vld [vmem:[%s302 + $0x20] sm:$0xff]
        %v561 = vld [vmem:[%s302 + $0x28] sm:$0xff]
        %v562 = vld [vmem:[%s302 + $0x30] sm:$0xff]
        %v563 = vld [vmem:[%s302 + $0x38] sm:$0xff]
        %v564 = vld [vmem:[%s353] sm:$0x3]
        %v566 = vperm.slane %v564, 0
        %v567 = vperm.slane %v564, 1
        %vm570 = vcmask 261120
        %v572 = vsel %vm570, %v554, 0
        %v575 = vsel %vm570, %v555, 0
        %577 = vmatpush.msra.mxu0 0.0
        %578 = vmatpush.msra.mxu0 0.0
        %579 = vmatpush.msra.mxu0 0.0
        %580 = vmatpush.msra.mxu0 0.0
        %581 = vmatpush.msra.mxu0 0.0
        %582 = vmatpush.msra.mxu0 0.0
        %583 = vmatpush.msra.mxu0 0.0
        %584 = vmatpush.msra.mxu0 0.0
        %585 = vmatpush.msra.mxu0 0.0
        %586 = vmatpush.msra.mxu0 0.0
        %587 = vmatpush.msra.mxu0 0.0
        %588 = vmatpush.msra.mxu0 0.0
        %589 = vmatpush.msra.mxu0 %v562
        %590 = vmatpush.msra.mxu0 %v560
        %591 = vmatpush.msra.mxu0 %v558
        %592 = vmatpush.msra.mxu0 %v556
        %593 = vmatmul.f32.gmra.mxu0 %v572
        %v594 = vpop.f32.mrf.mxu0
        %v595 = vadd.f32 %v566, %v594
        %596 = vmatmul.f32.gmra.mxu0 %v575
        %v597 = vpop.f32.mrf.mxu0
        %v598 = vadd.f32 %v566, %v597
        %599 = vdwg.mxu0
        %600 = vmatpush.msra.mxu0 0.0
        %601 = vmatpush.msra.mxu0 0.0
        %602 = vmatpush.msra.mxu0 0.0
        %603 = vmatpush.msra.mxu0 0.0
        %604 = vmatpush.msra.mxu0 0.0
        %605 = vmatpush.msra.mxu0 0.0
        %606 = vmatpush.msra.mxu0 0.0
        %607 = vmatpush.msra.mxu0 0.0
        %608 = vmatpush.msra.mxu0 0.0
        %609 = vmatpush.msra.mxu0 0.0
        %610 = vmatpush.msra.mxu0 0.0
        %611 = vmatpush.msra.mxu0 0.0
        %612 = vmatpush.msra.mxu0 %v563
        %613 = vmatpush.msra.mxu0 %v561
        %614 = vmatpush.msra.mxu0 %v559
        %615 = vmatpush.msra.mxu0 %v557
        %616 = vmatmul.f32.gmra.mxu0 %v572
        %v617 = vpop.f32.mrf.mxu0
        %v618 = vadd.f32 %v567, %v617
        %619 = vmatmul.f32.gmra.mxu0 %v575
        %v620 = vpop.f32.mrf.mxu0
        %v621 = vadd.f32 %v567, %v620
        %622 = vdwg.mxu0
        %623 = vst [vmem:[%s342] sm:$0xff] %v595
        %624 = vst [vmem:[%s342 + $0x8] sm:$0xff] %v618
        %625 = vst [vmem:[%s342 + $0x10] sm:$0xff] %v598
        %626 = vst [vmem:[%s342 + $0x18] sm:$0xff] %v621
        %s627 = sand.u32 %s208, 1
        %s628 = scalar_lea.sflag [#allocation5], %s627
        %s629 = sand.u32 %s208, 1
        %s630 = smul.addr %s629, 32
        %s631 = scalar_lea.vmem [#allocation6], %s630
        // Predicated region
        $region57: #{tpu_custom_call.1} parent=47 // pred_check
          %p632 = pneg %p218
        $region58: #{tpu_custom_call.1} parent=47 // pred_check_branch
          %634 = sbr.rel (%p632) target = $region60
        $region59: #{tpu_custom_call.1} parent=47 // pred_region
          %s635 = smul.u32 2, %s28
          %s636 = smul.u32 2, %s29
          %638 = vsyncadd %s628, 0
          %s639 = smul.addr %s635, 4
          %s640 = sadd.s32 %s636, %s639
          %s641 = smul.addr %s640, 8
          %s642 = scalar_lea.hbm %s7, %s641
          %s643 = sshll.u32 %s631, 4
          %s644 = int_to_ptr.vmem [resolvable:$true] %s643
          %s645 = sshll.u32 %s642, 4
          %s646 = int_to_ptr.hbm [resolvable:$true] %s645
          %651 = dma.vmem_to_hbm [thread:$0]  %s644, 512, %s646, %s628, 256, 512, 16
        $region60: #{tpu_custom_call.1} parent=47 // pred_fallthru
          _
      $region48: #{tpu_custom_call.1} parent=5 // pred_fallthru
        _
      %p652 = scmp.le.s32.totalorder 2, %s19
      // Predicated region
      $region61: #{tpu_custom_call.1} parent=5 // pred_check
        %p653 = pneg %p652
      $region62: #{tpu_custom_call.1} parent=5 // pred_check_branch
        %655 = sbr.rel (%p653) target = $region64
      $region63: #{tpu_custom_call.1} parent=5 // pred_region
        %s656 = ssub.s32 %s19, 2
        // Predicated region
        $region65: #{tpu_custom_call.1} parent=63 // pred_check
          %p657 = pneg %p224
        $region66: #{tpu_custom_call.1} parent=63 // pred_check_branch
          %659 = sbr.rel (%p657) target = $region68
        $region67: #{tpu_custom_call.1} parent=63 // pred_region
          %s660 = sand.u32 %s209, 1
          %s661 = scalar_lea.sflag [#allocation5], %s660
          %s662 = sand.u32 %s209, 1
          %s663 = smul.addr %s662, 32
          %s664 = scalar_lea.vmem [#allocation6], %s663
          %666 = dma.done %s661, 512
        $region68: #{tpu_custom_call.1} parent=63 // pred_fallthru
          _
      $region64: #{tpu_custom_call.1} parent=5 // pred_fallthru
        _
    $region6: #{tpu_custom_call.1} parent=1 // loop_footer
      %s23 = sadd.s32 1, %s19
    $region7: #{tpu_custom_call.1} parent=1 // loop_footer_branch
      %18 = sbr.rel target = $region3
    $region8: #{tpu_custom_call.1} parent=1 // loop_exit
      _
    %667 = vsyncpa [#allocation4], 1
    %s668 = scalar_lea.sflag [#allocation4], 1
    %669 = vsyncpa %s668, 1
    %670 = vsyncpa [#allocation5], 1
    %s671 = scalar_lea.sflag [#allocation5], 1
    %672 = vsyncpa %s671, 1

</llo_original>
